<compile_context>
chip_gen: v7x
topology: tpu7x:2x2x1
jax: 0.10.0
libtpu: 0.0.40
codegen_flags: <defaults>
</compile_context>

<pallas_src>
import functools

import jax
import jax.numpy as jnp
import numpy as np
from jax import lax
from jax.experimental import pallas as pl
from jax.experimental.pallas import tpu as pltpu

EMBED = 8
CONV_CH = 128
HIDDEN = 128


def _round_up(x, m):
    return (x + m - 1) // m * m


def _sigmoid_approx(x):
    # exp -> EUP, approximate reciprocal -> EUP; keeps the VALU slot free on
    # the hot conv-gating path.
    return pl.reciprocal(1.0 + jnp.exp(-x), approx=True)


def _sigmoid_exact(x):
    # Exact sigmoid for the LSTM recurrence (errors would compound per step).
    return 1.0 / (1.0 + jnp.exp(-x))


# ---------------------------------------------------------------------------
# Phase 1: fused gated conv (im2col matmul, 256 output lanes) + running max
# ---------------------------------------------------------------------------
def conv_pool_kernel(T, needs_mask, a_ref, w_ref, b_ref, pool_ref):
    # a_ref   : (1, TB, K)      bf16 im2col rows (K = EMBED*W, unpadded)
    # w_ref   : (K, 256)        bf16 fused conv1|conv2 weight
    # b_ref   : (1, 256)        f32 fused bias
    # pool_ref: (1, 1, 1, 128)  f32 running max, resident across the tb axis
    tb = pl.program_id(2)
    TB = a_ref.shape[1]

    @pl.when(tb == 0)
    def _():
        pool_ref[...] = jnp.full(pool_ref.shape, -jnp.inf, dtype=pool_ref.dtype)

    acc = jnp.dot(a_ref[0], w_ref[...],
                  preferred_element_type=jnp.float32) + b_ref[...]   # (TB, 256)
    gated = acc[:, :CONV_CH] * _sigmoid_approx(acc[:, CONV_CH:])     # (TB, 128)

    if needs_mask:
        # Only blocks whose global row range reaches past T carry padded
        # windows; all other blocks take the cheap unmasked max.
        g0 = (pl.program_id(1) * pl.num_programs(2) + tb) * TB       # first row
        has_pad = g0 + TB > T

        @pl.when(jnp.logical_not(has_pad))
        def _():
            pool_ref[0, 0] = jnp.maximum(
                pool_ref[0, 0], jnp.max(gated, axis=0, keepdims=True))

        @pl.when(has_pad)
        def _():
            row = lax.broadcasted_iota(jnp.int32, (TB, CONV_CH), 0) + g0
            masked = jnp.where(row < T, gated, -jnp.inf)
            pool_ref[0, 0] = jnp.maximum(
                pool_ref[0, 0], jnp.max(masked, axis=0, keepdims=True))
    else:
        pool_ref[0, 0] = jnp.maximum(
            pool_ref[0, 0], jnp.max(gated, axis=0, keepdims=True))


# ---------------------------------------------------------------------------
# Phase 2: LSTM recurrence (shared h,c across B, matching view(-1,1,128)) + fc
# ---------------------------------------------------------------------------
def lstm_fc_kernel(B, pooled_ref, wih_ref, whh_ref, blstm_ref,
                   wfc1_ref, bfc1_ref, wfc2_ref, bfc2_ref,
                   out_ref, hs_ref):
    H = HIDDEN
    # Hoisted input projection: one (B,128)x(128,512) bf16 matmul + bias,
    # outside the serial recurrence.
    gates_x = jnp.dot(pooled_ref[...].astype(jnp.bfloat16), wih_ref[...],
                      preferred_element_type=jnp.float32) + blstm_ref[...]
    whh = whh_ref[...]                                        # (128, 512) bf16

    def cell(gx, h, c):
        gates = gx + jnp.dot(h.astype(jnp.bfloat16), whh,
                             preferred_element_type=jnp.float32)
        i_g = _sigmoid_exact(gates[:, 0 * H:1 * H])
        f_g = _sigmoid_exact(gates[:, 1 * H:2 * H])
        g_g = jnp.tanh(gates[:, 2 * H:3 * H])
        o_g = _sigmoid_exact(gates[:, 3 * H:4 * H])
        c = f_g * c + i_g * g_g
        h = o_g * jnp.tanh(c)
        return h, c

    h = jnp.zeros((1, H), jnp.float32)
    c = jnp.zeros((1, H), jnp.float32)
    if B <= 16:
        # Small B: static unroll with scratch stores (no concatenate).
        for t in range(B):
            h, c = cell(gates_x[t:t + 1, :], h, c)
            hs_ref[pl.ds(t, 1), :] = h
    else:
        # Larger B: rolled loop bounds vreg live ranges / code size.
        def body(t, carry):
            h, c = carry
            gx = lax.dynamic_slice_in_dim(gates_x, t, 1, axis=0)
            h, c = cell(gx, h, c)
            hs_ref[pl.ds(t, 1), :] = h
            return h, c
        h, c = lax.fori_loop(0, B, body, (h, c))

    lstm_out = hs_ref[...].astype(jnp.bfloat16)               # (B, 128)
    fc1 = jnp.dot(lstm_out, wfc1_ref[...],
                  preferred_element_type=jnp.float32) + bfc1_ref[...]
    out_ref[...] = jnp.dot(fc1, wfc2_ref[...],
                           preferred_element_type=jnp.float32) + bfc2_ref[...]


# ---------------------------------------------------------------------------
# Wrapper helpers
# ---------------------------------------------------------------------------
def _vmem_capacity_bytes():
    try:
        return int(pltpu.get_tpu_info().vmem_capacity_bytes)
    except Exception:
        return 64 * 2**20          # conservative (v7x-sized) fallback


def _pick_t_block(T, K, vmem_cap):
    # Per-buffer activation tile budget: large tiles on 128 MiB parts
    # (v5e/v6e -> fill the MXU / approach HBM roofline), tighter on v7x.
    tile_budget = 8 * 2**20 if vmem_cap >= 96 * 2**20 else 3 * 2**20
    budget_rows = max(8, (tile_budget // (K * 2)) // 8 * 8)
    # ...but keep >= ~3 T-blocks per (batch, core-split) so the activation
    # DMA still overlaps the matmul instead of collapsing into one block.
    cap_rows = max(8, _round_up(pl.cdiv(T, 3), 8))
    return max(8, min(budget_rows, cap_rows))


# ---------------------------------------------------------------------------
# Wrapper
# ---------------------------------------------------------------------------
def mallstm_forward(x_tokens, params, window_size, *, t_block=None):
    """Pallas implementation of MalLSTM.forward. Returns (B, 1) float32."""
    B, L = x_tokens.shape
    W = window_size
    T = L // W                      # number of conv windows (= MaxPool kernel)
    K = EMBED * W                   # im2col row width (NOT padded to 128)

    vmem_cap = _vmem_capacity_bytes()
    if t_block is None:
        t_block = _pick_t_block(T, K, vmem_cap)
    TB = _round_up(max(int(t_block), 8), 8)

    num_tb = pl.cdiv(T, TB)
    # v7x has two TensorCores; when B == 1 the batch axis can't feed both, so
    # split the T-block axis over a second "parallel" grid axis instead.
    C = 2 if (B == 1 and num_tb >= 2) else 1
    tb_per_core = pl.cdiv(num_tb, C)
    T_pad = C * tb_per_core * TB
    needs_mask = (T_pad != T)

    # ---- JAX glue (single HBM pass): bf16 gather straight from a bf16 table;
    # only the cheap int32 token stream is padded; im2col is a free reshape.
    # TODO(synk): nn.Embedding gather is data-dependent; done in XLA.
    emb_bf16 = params["embed"].astype(jnp.bfloat16)
    x_tok = x_tokens[:, :T * W].astype(jnp.int32)
    if T_pad != T:
        x_tok = jnp.pad(x_tok, ((0, 0), (0, (T_pad - T) * W)))   # token 0 pads
    xe = jnp.take(emb_bf16, x_tok, axis=0)                    # (B, T_pad*W, 8)
    a = xe.reshape(B, T_pad, K)                                # cols = (tap, ch)

    # ---- fused conv weights: rows in (tap, channel) order, 256 output lanes -
    w1 = jnp.transpose(params["conv1_w"], (2, 1, 0))           # (W, 4, 128)
    w2 = jnp.transpose(params["conv2_w"], (2, 1, 0))           # (W, 4, 128)
    z = jnp.zeros((W, 4, CONV_CH), jnp.float32)
    w_fused = jnp.concatenate(
        [jnp.concatenate([w1, z], axis=1),                     # conv1 <- ch 0..3
         jnp.concatenate([z, w2], axis=1)],                    # conv2 <- ch 4..7
        axis=2).reshape(K, 2 * CONV_CH).astype(jnp.bfloat16)
    b_fused = jnp.concatenate(
        [params["conv1_b"], params["conv2_b"]]).reshape(1, 2 * CONV_CH)

    # ---- VMEM budget (per generation) ---------------------------------------
    a_tile_bytes = TB * K * 2
    w_bytes = K * 2 * CONV_CH * 2
    usage = 2 * a_tile_bytes + 2 * w_bytes + (2 << 20)
    vmem_limit = int(max(16 * 2**20, min(usage + (6 << 20), vmem_cap * 3 // 4)))

    cost = pl.CostEstimate(
        flops=2 * B * T_pad * K * 2 * CONV_CH + 8 * B * T_pad * CONV_CH,
        transcendentals=B * T_pad * CONV_CH,
        bytes_accessed=int(a.size * 2 + w_fused.size * 2
                           + b_fused.size * 4 + B * C * CONV_CH * 4))

    def _phase1(weights_single_buffered):
        extra = ({"pipeline_mode": pl.Buffered(1)}
                 if weights_single_buffered else {})
        return pl.pallas_call(
            functools.partial(conv_pool_kernel, T, needs_mask),
            out_shape=jax.ShapeDtypeStruct((B, C, 1, CONV_CH), jnp.float32),
            grid=(B, C, tb_per_core),
            in_specs=[
                pl.BlockSpec((1, TB, K),
                             lambda b, c, t: (b, c * tb_per_core + t, 0)),
                pl.BlockSpec((K, 2 * CONV_CH), lambda b, c, t: (0, 0), **extra),
                pl.BlockSpec((1, 2 * CONV_CH), lambda b, c, t: (0, 0), **extra),
            ],
            out_specs=pl.BlockSpec((1, 1, 1, CONV_CH),
                                   lambda b, c, t: (b, c, 0, 0)),
            compiler_params=pltpu.CompilerParams(
                dimension_semantics=("parallel", "parallel", "arbitrary"),
                vmem_limit_bytes=vmem_limit),
            cost_estimate=cost,
        )(a, w_fused, b_fused)

    try:
        # Constant-index weight/bias blocks: single VMEM buffer (no redundant
        # second copy); the saved VMEM buys a bigger activation tile.
        pooled_parts = _phase1(True)
    except Exception:
        # Fallback if this Pallas build rejects pl.Buffered(1).
        pooled_parts = _phase1(False)

    pooled = jnp.max(pooled_parts.reshape(B, C, CONV_CH), axis=1)   # (B, 128)

    # ---- tiny LSTM + fc epilogue (grid-less, fully VMEM resident) -----------
    wih_bf = params["w_ih"].T.astype(jnp.bfloat16)             # (128, 512)
    whh_bf = params["w_hh"].T.astype(jnp.bfloat16)             # (128, 512)
    b_lstm = (params["b_ih"] + params["b_hh"]).reshape(1, 4 * HIDDEN)
    wfc1_bf = params["fc1_w"].T.astype(jnp.bfloat16)           # (128, 128)
    bfc1 = params["fc1_b"].reshape(1, HIDDEN)
    # fc_2 lane-padded to 128 output columns (real logit in col 0) so the
    # final store stays lane-dense.
    wfc2_pad = jnp.zeros((HIDDEN, 128), jnp.float32).at[:, 0].set(params["fc2_w"][0])
    bfc2_pad = jnp.zeros((1, 128), jnp.float32).at[0, 0].set(params["fc2_b"][0])

    vmem = pl.BlockSpec(memory_space=pltpu.MemorySpace.VMEM)
    out = pl.pallas_call(
        functools.partial(lstm_fc_kernel, B),
        out_shape=jax.ShapeDtypeStruct((B, 128), jnp.float32),
        in_specs=[vmem] * 8,
        out_specs=vmem,
        scratch_shapes=[pltpu.VMEM((B, HIDDEN), jnp.float32)],
    )(pooled, wih_bf, whh_bf, b_lstm, wfc1_bf, bfc1, wfc2_pad, bfc2_pad)
    return out[:, :1]                                          # (B, 1)


# ---------------------------------------------------------------------------
# Plain-JAX reference (mirrors the PyTorch forward) + params
# ---------------------------------------------------------------------------
def reference_forward(x_tokens, params, window_size):
    B, L = x_tokens.shape
    W = window_size
    T = L // W
    xe = jnp.take(params["embed"], x_tokens, axis=0)           # (B, L, 8)
    xt = jnp.transpose(xe, (0, 2, 1))                          # (B, 8, L)

    def conv(xc, w, b):                                        # xc (B,4,L), w (128,4,W)
        cols = xc.reshape(B, 4, T, W)                          # stride == window
        return jnp.einsum("bctk,ock->bot", cols, w) + b[None, :, None]

    c1 = conv(xt[:, 0:4], params["conv1_w"], params["conv1_b"])
    c2 = conv(xt[:, 4:8], params["conv2_w"], params["conv2_b"])
    g = c1 * (1.0 / (1.0 + jnp.exp(-c2)))                      # (B, 128, T)
    pooled = jnp.max(g, axis=2)                                # (B, 128)

    h = jnp.zeros((HIDDEN,), jnp.float32)
    c = jnp.zeros((HIDDEN,), jnp.float32)
    outs = []
    for t in range(B):
        gates = (params["w_ih"] @ pooled[t] + params["b_ih"]
                 + params["w_hh"] @ h + params["b_hh"])
        i_g = 1.0 / (1.0 + jnp.exp(-gates[0:128]))
        f_g = 1.0 / (1.0 + jnp.exp(-gates[128:256]))
        g_g = jnp.tanh(gates[256:384])
        o_g = 1.0 / (1.0 + jnp.exp(-gates[384:512]))
        c = f_g * c + i_g * g_g
        h = o_g * jnp.tanh(c)
        outs.append(h)
    hs = jnp.stack(outs)                                       # (B, 128)
    fc1 = hs @ params["fc1_w"].T + params["fc1_b"]
    return fc1 @ params["fc2_w"].T + params["fc2_b"]           # (B, 1)


def init_params(key, window_size):
    W = window_size
    ks = jax.random.split(key, 12)
    s = 0.05
    emb = jax.random.normal(ks[0], (257, EMBED), jnp.float32)
    emb = emb.at[0].set(0.0)                                   # padding_idx=0
    return dict(
        embed=emb,
        conv1_w=s * jax.random.normal(ks[1], (CONV_CH, 4, W), jnp.float32),
        conv1_b=s * jax.random.normal(ks[2], (CONV_CH,), jnp.float32),
        conv2_w=s * jax.random.normal(ks[3], (CONV_CH, 4, W), jnp.float32),
        conv2_b=s * jax.random.normal(ks[4], (CONV_CH,), jnp.float32),
        w_ih=s * jax.random.normal(ks[5], (4 * HIDDEN, HIDDEN), jnp.float32),
        w_hh=s * jax.random.normal(ks[6], (4 * HIDDEN, HIDDEN), jnp.float32),
        b_ih=s * jax.random.normal(ks[7], (4 * HIDDEN,), jnp.float32),
        b_hh=s * jax.random.normal(ks[8], (4 * HIDDEN,), jnp.float32),
        fc1_w=s * jax.random.normal(ks[9], (HIDDEN, HIDDEN), jnp.float32),
        fc1_b=s * jax.random.normal(ks[10], (HIDDEN,), jnp.float32),
        fc2_w=s * jax.random.normal(ks[11], (1, HIDDEN), jnp.float32),
        fc2_b=jnp.zeros((1,), jnp.float32),
    )


if __name__ == "__main__":
    # Small, self-consistent config: input_length=72, window_size=stride=4,
    # embed=8 -> T = 72/4 = 18 conv windows, MaxPool kernel = 18.
    # t_block=8 forces 3 T-blocks per batch element, exercising the running
    # max accumulator, the pl.when init, and tail-block-only masking.
    B, L, WINDOW = 2, 72, 4

    root = jax.random.PRNGKey(0)
    k_params, k_tokens = jax.random.split(root)
    params = init_params(k_params, WINDOW)
    x_tokens = jax.random.randint(k_tokens, (B, L), 0, 257, dtype=jnp.int32)

    out = mallstm_forward(x_tokens, params, WINDOW, t_block=8)
    out = jax.block_until_ready(out)
    ref = reference_forward(x_tokens, params, WINDOW)
    np.testing.assert_allclose(np.asarray(out), np.asarray(ref),
                               rtol=1e-2, atol=1e-2)
    assert out.shape == (B, 1)

    # Single-stream (B=1) path: exercises the 2-way T-block core split that
    # keeps both v7x TensorCores busy, including fully-padded tail blocks.
    out1 = mallstm_forward(x_tokens[:1], params, WINDOW, t_block=8)
    out1 = jax.block_until_ready(out1)
    ref1 = reference_forward(x_tokens[:1], params, WINDOW)
    np.testing.assert_allclose(np.asarray(out1), np.asarray(ref1),
                               rtol=1e-2, atol=1e-2)

    print("KERNEL_OK")
</pallas_src>

<mosaic_0001>
module attributes {stable_mosaic.version = 11 : i64} {
  func.func @conv_pool_kernel(%arg0: i32, %arg1: i32, %arg2: i32, %arg3: memref<1x8x32xbf16, #tpu.memory_space<vmem>>, %arg4: memref<32x256xbf16, #tpu.memory_space<vmem>>, %arg5: memref<1x256xf32, #tpu.memory_space<vmem>>, %arg6: memref<1x1x1x128xf32, #tpu.memory_space<vmem>>) attributes {dimension_semantics = [#tpu.dimension_semantics<parallel>, #tpu.dimension_semantics<parallel>, #tpu.dimension_semantics<arbitrary>], iteration_bounds = array<i64: 2, 1, 3>, scalar_prefetch = 0 : i64, scratch_operands = 0 : i64, tpu.core_type = #tpu.core_type<tc>, window_params = [{transform_indices = @transform_0, window_bounds = array<i64: 1, 8, 32>}, {pipeline_mode = #tpu.pipeline_mode<synchronous>, transform_indices = @transform_1, window_bounds = array<i64: 32, 256>}, {pipeline_mode = #tpu.pipeline_mode<synchronous>, transform_indices = @transform_2, window_bounds = array<i64: 1, 256>}, {transform_indices = @transform_3, window_bounds = array<i64: 1, 1, 1, 128>}]} {
    %c0_i32 = arith.constant 0 : i32
    %0 = arith.cmpi eq, %arg2, %c0_i32 : i32
    %1 = arith.extui %0 : i1 to i32
    %c0_i32_0 = arith.constant 0 : i32
    %2 = arith.cmpi ne, %1, %c0_i32_0 : i32
    scf.if %2 {
      %cst_12 = arith.constant 0xFF800000 : f32
      %29 = vector.broadcast %cst_12 : f32 to vector<1x1x1x128xf32>
      %c0_13 = arith.constant 0 : index
      %c0_14 = arith.constant 0 : index
      %c0_15 = arith.constant 0 : index
      %c0_16 = arith.constant 0 : index
      %30 = vector.load %arg6[%c0_13, %c0_14, %c0_15, %c0_16] : memref<1x1x1x128xf32, #tpu.memory_space<vmem>>, vector<1x1x1x128xf32>
      tpu.vector_store %arg6[%c0_13, %c0_14, %c0_15, %c0_16], %29 {strides = array<i32>} : memref<1x1x1x128xf32, #tpu.memory_space<vmem>>, vector<1x1x1x128xf32>,
    } else {
    }
    %c0 = arith.constant 0 : index
    %c0_1 = arith.constant 0 : index
    %c0_2 = arith.constant 0 : index
    %3 = vector.load %arg3[%c0, %c0_1, %c0_2] : memref<1x8x32xbf16, #tpu.memory_space<vmem>>, vector<1x8x32xbf16>
    %4 = vector.shape_cast %3 : vector<1x8x32xbf16> to vector<8x32xbf16>
    %c0_3 = arith.constant 0 : index
    %c0_4 = arith.constant 0 : index
    %5 = vector.load %arg4[%c0_3, %c0_4] : memref<32x256xbf16, #tpu.memory_space<vmem>>, vector<32x256xbf16>
    %cst = arith.constant dense<0.000000e+00> : vector<8x256xf32>
    %6 = tpu.matmul %4, %5, %cst {dimension_numbers = #tpu.dot_dimension_numbers<[1], [0], [0], [1], [0, 0, 1, 1], [], []>} : vector<8x32xbf16>, vector<32x256xbf16>, vector<8x256xf32> -> vector<8x256xf32>
    %c0_5 = arith.constant 0 : index
    %c0_6 = arith.constant 0 : index
    %7 = vector.load %arg5[%c0_5, %c0_6] : memref<1x256xf32, #tpu.memory_space<vmem>>, vector<1x256xf32>
    %8 = vector.broadcast %7 : vector<1x256xf32> to vector<8x256xf32>
    %9 = arith.addf %6, %8 : vector<8x256xf32>
    %10 = vector.extract_strided_slice %9 {offsets = [0, 0], sizes = [8, 128], strides = [1, 1]} : vector<8x256xf32> to vector<8x128xf32>
    %11 = vector.extract_strided_slice %9 {offsets = [0, 128], sizes = [8, 128], strides = [1, 1]} : vector<8x256xf32> to vector<8x128xf32>
    %cst_7 = arith.constant 0.000000e+00 : f32
    %12 = vector.broadcast %cst_7 : f32 to vector<8x128xf32>
    %13 = arith.subf %12, %11 : vector<8x128xf32>
    %14 = math.exp %13 : vector<8x128xf32>
    %cst_8 = arith.constant 1.000000e+00 : f32
    %15 = vector.broadcast %cst_8 : f32 to vector<8x128xf32>
    %16 = arith.addf %15, %14 : vector<8x128xf32>
    %17 = tpu.reciprocal %16 {approx = true} : vector<8x128xf32> -> vector<8x128xf32>
    %18 = arith.mulf %10, %17 : vector<8x128xf32>
    %c3_i32 = arith.constant 3 : i32
    %19 = arith.muli %arg1, %c3_i32 : i32
    %20 = arith.addi %19, %arg2 : i32
    %c8_i32 = arith.constant 8 : i32
    %21 = arith.muli %20, %c8_i32 : i32
    %c8_i32_9 = arith.constant 8 : i32
    %22 = arith.addi %21, %c8_i32_9 : i32
    %c18_i32 = arith.constant 18 : i32
    %23 = arith.cmpi sgt, %22, %c18_i32 : i32
    %true = arith.constant true
    %24 = arith.xori %23, %true : i1
    %25 = arith.extui %24 : i1 to i32
    %c0_i32_10 = arith.constant 0 : i32
    %26 = arith.cmpi ne, %25, %c0_i32_10 : i32
    scf.if %26 {
      %c0_12 = arith.constant 0 : index
      %c0_13 = arith.constant 0 : index
      %c0_14 = arith.constant 0 : index
      %c0_15 = arith.constant 0 : index
      %29 = vector.load %arg6[%c0_12, %c0_13, %c0_14, %c0_15] : memref<1x1x1x128xf32, #tpu.memory_space<vmem>>, vector<1x1x1x128xf32>
      %30 = vector.shape_cast %29 : vector<1x1x1x128xf32> to vector<1x128xf32>
      %cst_16 = arith.constant dense<0xFF800000> : vector<128xf32>
      %31 = vector.multi_reduction <maximumf>, %18, %cst_16 [0] : vector<8x128xf32> to vector<128xf32>
      %32 = vector.shape_cast %31 : vector<128xf32> to vector<1x128xf32>
      %33 = arith.maximumf %30, %32 : vector<1x128xf32>
      %c0_17 = arith.constant 0 : index
      %c0_18 = arith.constant 0 : index
      %c0_19 = arith.constant 0 : index
      %c0_20 = arith.constant 0 : index
      %34 = vector.load %arg6[%c0_17, %c0_18, %c0_19, %c0_20] : memref<1x1x1x128xf32, #tpu.memory_space<vmem>>, vector<1x1x1x128xf32>
      %35 = vector.shape_cast %34 : vector<1x1x1x128xf32> to vector<1x128xf32>
      %36 = vector.shape_cast %33 : vector<1x128xf32> to vector<1x1x1x128xf32>
      tpu.vector_store %arg6[%c0_17, %c0_18, %c0_19, %c0_20], %36 {strides = array<i32>} : memref<1x1x1x128xf32, #tpu.memory_space<vmem>>, vector<1x1x1x128xf32>,
    } else {
    }
    %27 = arith.extui %23 : i1 to i32
    %c0_i32_11 = arith.constant 0 : i32
    %28 = arith.cmpi ne, %27, %c0_i32_11 : i32
    scf.if %28 {
      %29 = tpu.iota {dimensions = array<i32: 0>} : vector<8x128xi32>
      %30 = vector.broadcast %21 : i32 to vector<8x128xi32>
      %31 = arith.addi %29, %30 : vector<8x128xi32>
      %c18_i32_12 = arith.constant 18 : i32
      %32 = vector.broadcast %c18_i32_12 : i32 to vector<8x128xi32>
      %33 = arith.cmpi slt, %31, %32 : vector<8x128xi32>
      %cst_13 = arith.constant 0xFF800000 : f32
      %34 = vector.broadcast %cst_13 : f32 to vector<8x128xf32>
      %35 = arith.select %33, %18, %34 : vector<8x128xi1>, vector<8x128xf32>
      %c0_14 = arith.constant 0 : index
      %c0_15 = arith.constant 0 : index
      %c0_16 = arith.constant 0 : index
      %c0_17 = arith.constant 0 : index
      %36 = vector.load %arg6[%c0_14, %c0_15, %c0_16, %c0_17] : memref<1x1x1x128xf32, #tpu.memory_space<vmem>>, vector<1x1x1x128xf32>
      %37 = vector.shape_cast %36 : vector<1x1x1x128xf32> to vector<1x128xf32>
      %cst_18 = arith.constant dense<0xFF800000> : vector<128xf32>
      %38 = vector.multi_reduction <maximumf>, %35, %cst_18 [0] : vector<8x128xf32> to vector<128xf32>
      %39 = vector.shape_cast %38 : vector<128xf32> to vector<1x128xf32>
      %40 = arith.maximumf %37, %39 : vector<1x128xf32>
      %c0_19 = arith.constant 0 : index
      %c0_20 = arith.constant 0 : index
      %c0_21 = arith.constant 0 : index
      %c0_22 = arith.constant 0 : index
      %41 = vector.load %arg6[%c0_19, %c0_20, %c0_21, %c0_22] : memref<1x1x1x128xf32, #tpu.memory_space<vmem>>, vector<1x1x1x128xf32>
      %42 = vector.shape_cast %41 : vector<1x1x1x128xf32> to vector<1x128xf32>
      %43 = vector.shape_cast %40 : vector<1x128xf32> to vector<1x1x1x128xf32>
      tpu.vector_store %arg6[%c0_19, %c0_20, %c0_21, %c0_22], %43 {strides = array<i32>} : memref<1x1x1x128xf32, #tpu.memory_space<vmem>>, vector<1x1x1x128xf32>,
    } else {
    }
    return
  }
  func.func @transform_0(%arg0: i32, %arg1: i32, %arg2: i32) -> (i32, i32, i32) {
    %c3_i32 = arith.constant 3 : i32
    %0 = arith.muli %arg1, %c3_i32 : i32
    %1 = arith.addi %0, %arg2 : i32
    %c0_i32 = arith.constant 0 : i32
    %c0_i32_0 = arith.constant 0 : i32
    return %arg0, %1, %c0_i32 : i32, i32, i32
  }
  func.func @transform_1(%arg0: i32, %arg1: i32, %arg2: i32) -> (i32, i32) {
    %c0_i32 = arith.constant 0 : i32
    %c0_i32_0 = arith.constant 0 : i32
    %c0_i32_1 = arith.constant 0 : i32
    return %c0_i32, %c0_i32_0 : i32, i32
  }
  func.func @transform_2(%arg0: i32, %arg1: i32, %arg2: i32) -> (i32, i32) {
    %c0_i32 = arith.constant 0 : i32
    %c0_i32_0 = arith.constant 0 : i32
    %c0_i32_1 = arith.constant 0 : i32
    return %c0_i32, %c0_i32_0 : i32, i32
  }
  func.func @transform_3(%arg0: i32, %arg1: i32, %arg2: i32) -> (i32, i32, i32, i32) {
    %c0_i32 = arith.constant 0 : i32
    %c0_i32_0 = arith.constant 0 : i32
    %c0_i32_1 = arith.constant 0 : i32
    return %arg0, %arg1, %c0_i32, %c0_i32_0 : i32, i32, i32, i32
  }
}

module attributes {stable_mosaic.version = 11 : i64} {
  func.func @conv_pool_kernel(%arg0: i32, %arg1: i32, %arg2: i32, %arg3: memref<1x8x32xbf16, #tpu.memory_space<vmem>>, %arg4: memref<32x256xbf16, #tpu.memory_space<vmem>>, %arg5: memref<1x256xf32, #tpu.memory_space<vmem>>, %arg6: memref<1x1x1x128xf32, #tpu.memory_space<vmem>>) attributes {dimension_semantics = [#tpu.dimension_semantics<parallel>, #tpu.dimension_semantics<parallel>, #tpu.dimension_semantics<arbitrary>], iteration_bounds = array<i64: 2, 1, 3>, scalar_prefetch = 0 : i64, scratch_operands = 0 : i64, tpu.core_type = #tpu.core_type<tc>, window_params = [{transform_indices = @transform_0, window_bounds = array<i64: 1, 8, 32>}, {pipeline_mode = #tpu.pipeline_mode<synchronous>, transform_indices = @transform_1, window_bounds = array<i64: 32, 256>}, {pipeline_mode = #tpu.pipeline_mode<synchronous>, transform_indices = @transform_2, window_bounds = array<i64: 1, 256>}, {transform_indices = @transform_3, window_bounds = array<i64: 1, 1, 1, 128>}]} {
    %c0_i32 = arith.constant 0 : i32
    %0 = arith.cmpi eq, %arg2, %c0_i32 : i32
    %1 = arith.extui %0 : i1 to i32
    %c0_i32_0 = arith.constant 0 : i32
    %2 = arith.cmpi ne, %1, %c0_i32_0 : i32
    scf.if %2 {
      %cst_12 = arith.constant 0xFF800000 : f32
      %29 = vector.broadcast %cst_12 : f32 to vector<1x1x1x128xf32>
      %c0_13 = arith.constant 0 : index
      %c0_14 = arith.constant 0 : index
      %c0_15 = arith.constant 0 : index
      %c0_16 = arith.constant 0 : index
      %30 = vector.load %arg6[%c0_13, %c0_14, %c0_15, %c0_16] : memref<1x1x1x128xf32, #tpu.memory_space<vmem>>, vector<1x1x1x128xf32>
      tpu.vector_store %arg6[%c0_13, %c0_14, %c0_15, %c0_16], %29 {strides = array<i32>} : memref<1x1x1x128xf32, #tpu.memory_space<vmem>>, vector<1x1x1x128xf32>,
    } else {
    }
    %c0 = arith.constant 0 : index
    %c0_1 = arith.constant 0 : index
    %c0_2 = arith.constant 0 : index
    %3 = vector.load %arg3[%c0, %c0_1, %c0_2] : memref<1x8x32xbf16, #tpu.memory_space<vmem>>, vector<1x8x32xbf16>
    %4 = vector.shape_cast %3 : vector<1x8x32xbf16> to vector<8x32xbf16>
    %c0_3 = arith.constant 0 : index
    %c0_4 = arith.constant 0 : index
    %5 = vector.load %arg4[%c0_3, %c0_4] : memref<32x256xbf16, #tpu.memory_space<vmem>>, vector<32x256xbf16>
    %cst = arith.constant dense<0.000000e+00> : vector<8x256xf32>
    %6 = tpu.matmul %4, %5, %cst {dimension_numbers = #tpu.dot_dimension_numbers<[1], [0], [0], [1], [0, 0, 1, 1], [], []>} : vector<8x32xbf16>, vector<32x256xbf16>, vector<8x256xf32> -> vector<8x256xf32>
    %c0_5 = arith.constant 0 : index
    %c0_6 = arith.constant 0 : index
    %7 = vector.load %arg5[%c0_5, %c0_6] : memref<1x256xf32, #tpu.memory_space<vmem>>, vector<1x256xf32>
    %8 = vector.broadcast %7 : vector<1x256xf32> to vector<8x256xf32>
    %9 = arith.addf %6, %8 : vector<8x256xf32>
    %10 = vector.extract_strided_slice %9 {offsets = [0, 0], sizes = [8, 128], strides = [1, 1]} : vector<8x256xf32> to vector<8x128xf32>
    %11 = vector.extract_strided_slice %9 {offsets = [0, 128], sizes = [8, 128], strides = [1, 1]} : vector<8x256xf32> to vector<8x128xf32>
    %cst_7 = arith.constant 0.000000e+00 : f32
    %12 = vector.broadcast %cst_7 : f32 to vector<8x128xf32>
    %13 = arith.subf %12, %11 : vector<8x128xf32>
    %14 = math.exp %13 : vector<8x128xf32>
    %cst_8 = arith.constant 1.000000e+00 : f32
    %15 = vector.broadcast %cst_8 : f32 to vector<8x128xf32>
    %16 = arith.addf %15, %14 : vector<8x128xf32>
    %17 = tpu.reciprocal %16 {approx = true} : vector<8x128xf32> -> vector<8x128xf32>
    %18 = arith.mulf %10, %17 : vector<8x128xf32>
    %c3_i32 = arith.constant 3 : i32
    %19 = arith.muli %arg1, %c3_i32 : i32
    %20 = arith.addi %19, %arg2 : i32
    %c8_i32 = arith.constant 8 : i32
    %21 = arith.muli %20, %c8_i32 : i32
    %c8_i32_9 = arith.constant 8 : i32
    %22 = arith.addi %21, %c8_i32_9 : i32
    %c18_i32 = arith.constant 18 : i32
    %23 = arith.cmpi sgt, %22, %c18_i32 : i32
    %true = arith.constant true
    %24 = arith.xori %23, %true : i1
    %25 = arith.extui %24 : i1 to i32
    %c0_i32_10 = arith.constant 0 : i32
    %26 = arith.cmpi ne, %25, %c0_i32_10 : i32
    scf.if %26 {
      %c0_12 = arith.constant 0 : index
      %c0_13 = arith.constant 0 : index
      %c0_14 = arith.constant 0 : index
      %c0_15 = arith.constant 0 : index
      %29 = vector.load %arg6[%c0_12, %c0_13, %c0_14, %c0_15] : memref<1x1x1x128xf32, #tpu.memory_space<vmem>>, vector<1x1x1x128xf32>
      %30 = vector.shape_cast %29 : vector<1x1x1x128xf32> to vector<1x128xf32>
      %cst_16 = arith.constant dense<0xFF800000> : vector<128xf32>
      %31 = vector.multi_reduction <maximumf>, %18, %cst_16 [0] : vector<8x128xf32> to vector<128xf32>
      %32 = vector.shape_cast %31 : vector<128xf32> to vector<1x128xf32>
      %33 = arith.maximumf %30, %32 : vector<1x128xf32>
      %c0_17 = arith.constant 0 : index
      %c0_18 = arith.constant 0 : index
      %c0_19 = arith.constant 0 : index
      %c0_20 = arith.constant 0 : index
      %34 = vector.load %arg6[%c0_17, %c0_18, %c0_19, %c0_20] : memref<1x1x1x128xf32, #tpu.memory_space<vmem>>, vector<1x1x1x128xf32>
      %35 = vector.shape_cast %34 : vector<1x1x1x128xf32> to vector<1x128xf32>
      %36 = vector.shape_cast %33 : vector<1x128xf32> to vector<1x1x1x128xf32>
      tpu.vector_store %arg6[%c0_17, %c0_18, %c0_19, %c0_20], %36 {strides = array<i32>} : memref<1x1x1x128xf32, #tpu.memory_space<vmem>>, vector<1x1x1x128xf32>,
    } else {
    }
    %27 = arith.extui %23 : i1 to i32
    %c0_i32_11 = arith.constant 0 : i32
    %28 = arith.cmpi ne, %27, %c0_i32_11 : i32
    scf.if %28 {
      %29 = tpu.iota {dimensions = array<i32: 0>} : vector<8x128xi32>
      %30 = vector.broadcast %21 : i32 to vector<8x128xi32>
      %31 = arith.addi %29, %30 : vector<8x128xi32>
      %c18_i32_12 = arith.constant 18 : i32
      %32 = vector.broadcast %c18_i32_12 : i32 to vector<8x128xi32>
      %33 = arith.cmpi slt, %31, %32 : vector<8x128xi32>
      %cst_13 = arith.constant 0xFF800000 : f32
      %34 = vector.broadcast %cst_13 : f32 to vector<8x128xf32>
      %35 = arith.select %33, %18, %34 : vector<8x128xi1>, vector<8x128xf32>
      %c0_14 = arith.constant 0 : index
      %c0_15 = arith.constant 0 : index
      %c0_16 = arith.constant 0 : index
      %c0_17 = arith.constant 0 : index
      %36 = vector.load %arg6[%c0_14, %c0_15, %c0_16, %c0_17] : memref<1x1x1x128xf32, #tpu.memory_space<vmem>>, vector<1x1x1x128xf32>
      %37 = vector.shape_cast %36 : vector<1x1x1x128xf32> to vector<1x128xf32>
      %cst_18 = arith.constant dense<0xFF800000> : vector<128xf32>
      %38 = vector.multi_reduction <maximumf>, %35, %cst_18 [0] : vector<8x128xf32> to vector<128xf32>
      %39 = vector.shape_cast %38 : vector<128xf32> to vector<1x128xf32>
      %40 = arith.maximumf %37, %39 : vector<1x128xf32>
      %c0_19 = arith.constant 0 : index
      %c0_20 = arith.constant 0 : index
      %c0_21 = arith.constant 0 : index
      %c0_22 = arith.constant 0 : index
      %41 = vector.load %arg6[%c0_19, %c0_20, %c0_21, %c0_22] : memref<1x1x1x128xf32, #tpu.memory_space<vmem>>, vector<1x1x1x128xf32>
      %42 = vector.shape_cast %41 : vector<1x1x1x128xf32> to vector<1x128xf32>
      %43 = vector.shape_cast %40 : vector<1x128xf32> to vector<1x1x1x128xf32>
      tpu.vector_store %arg6[%c0_19, %c0_20, %c0_21, %c0_22], %43 {strides = array<i32>} : memref<1x1x1x128xf32, #tpu.memory_space<vmem>>, vector<1x1x1x128xf32>,
    } else {
    }
    return
  }
  func.func @transform_0(%arg0: i32, %arg1: i32, %arg2: i32) -> (i32, i32, i32) {
    %c3_i32 = arith.constant 3 : i32
    %0 = arith.muli %arg1, %c3_i32 : i32
    %1 = arith.addi %0, %arg2 : i32
    %c0_i32 = arith.constant 0 : i32
    %c0_i32_0 = arith.constant 0 : i32
    return %arg0, %1, %c0_i32 : i32, i32, i32
  }
  func.func @transform_1(%arg0: i32, %arg1: i32, %arg2: i32) -> (i32, i32) {
    %c0_i32 = arith.constant 0 : i32
    %c0_i32_0 = arith.constant 0 : i32
    %c0_i32_1 = arith.constant 0 : i32
    return %c0_i32, %c0_i32_0 : i32, i32
  }
  func.func @transform_2(%arg0: i32, %arg1: i32, %arg2: i32) -> (i32, i32) {
    %c0_i32 = arith.constant 0 : i32
    %c0_i32_0 = arith.constant 0 : i32
    %c0_i32_1 = arith.constant 0 : i32
    return %c0_i32, %c0_i32_0 : i32, i32
  }
  func.func @transform_3(%arg0: i32, %arg1: i32, %arg2: i32) -> (i32, i32, i32, i32) {
    %c0_i32 = arith.constant 0 : i32
    %c0_i32_0 = arith.constant 0 : i32
    %c0_i32_1 = arith.constant 0 : i32
    return %arg0, %arg1, %c0_i32, %c0_i32_0 : i32, i32, i32, i32
  }
}

</mosaic_0001>

<llo_original>
// kernel: tpu_custom_call.1
$region0: #{tpu_custom_call.1}
  #allocation0 [shape = 'u32[]', space=smem, size = 0x4, offset = 0x4, fixed_abs, tag = 'smem constant byte address 0x4 - core index']
  #allocation1 [shape = 'u32[144,128]{1,0:T(1,128)}', space=vmem, size = 0x12000, scoped, tag = 'internal scratch']
  %s0 = inlined_call_operand.hbm [shape: bf16[2,24,32], index: 0, kind: input, shape index: {}]
  %s1 = inlined_call_operand.hbm [shape: bf16[32,256], index: 1, kind: input, shape index: {}]
  %s2 = inlined_call_operand.vmem [shape: f32[1,256], index: 2, kind: input, shape index: {}]
  %s3 = inlined_call_operand.hbm [shape: f32[2,1,1,128], index: 3, kind: output, shape index: {}]
  %s4 = sld [smem:[#allocation0]]
  $region65: #{tpu_custom_call.1} parent=0
    _
  %s6 = ssub.s32 1, %s4
  %s7 = scalar_select 0, %s6, %s4
  $region1: #{tpu_custom_call.1} parent=0
    #allocation2 [shape = 'u8[4096]{0}', space=vmem, size = 0x1000, scoped, tag = 'input window, operand 0']
    #allocation3 [shape = 's32[2]{0}', space=sflag, size = 0x8, scoped, tag = 'scoped memory for tpu_custom_call.1']
    #allocation4 [shape = 's32[2]{0}', space=sflag, size = 0x8, scoped, tag = 'scoped memory for tpu_custom_call.1']
    #allocation5 [shape = 'u8[16384]{0}', space=vmem, size = 0x4000, scoped, tag = 'input window, operand 1, single buffered']
    #allocation6 [shape = 's32[1]{0}', space=sflag, size = 0x4, scoped, tag = 'scoped memory for tpu_custom_call.1']
    #allocation7 [shape = 'u8[1024]{0}', space=vmem, size = 0x400, scoped, tag = 'output window, operand 0']
    %8 = vsyncpa [#allocation3], 0
    %s9 = scalar_lea.sflag [#allocation3], 1
    %10 = vsyncpa %s9, 0
    %11 = vsyncpa [#allocation6], 0
    %12 = vsyncpa [#allocation4], 0
    %s13 = scalar_lea.sflag [#allocation4], 1
    %14 = vsyncpa %s13, 0
    loop: start=0, step=1, limit=8
    $region2: #{tpu_custom_call.1} parent=1 // loop_pre_header
      _
    $region3: #{tpu_custom_call.1} parent=1 // loop_header
      %s16 = sphi 0, %s20
      %p17 = scmp.ge.s32.totalorder %s16, 8
      %s23 = sphi 0, %s42
      %s24 = sphi 0, %s38
      %s25 = sphi 0, %s34
      %s26 = sphi 0, %s23
      %s27 = sphi 0, %s24
      %s28 = sphi 0, %s25
      %s29 = sphi 0, %s26
      %s30 = sphi 0, %s27
      %s31 = sphi 0, %s28
      %s51 = sphi 0, %s53
      %s54 = sphi 0, %s51
      %s55 = sphi 0, %s54
      %s71 = sphi 0, %s55
      %s75 = sphi 0, %s75
      %s77 = sphi 0, %s75
      %s78 = sphi 0, %s77
      %s92 = sphi 0, %s78
      %s96 = sphi 0, %s96
      %s98 = sphi 0, %s96
      %s99 = sphi 0, %s98
      %s113 = sphi 0, %s99
      %s121 = sphi 0, %s123
      %s124 = sphi 0, %s121
      %s125 = sphi 0, %s124
      %s141 = sphi 0, %s125
    $region4: #{tpu_custom_call.1} parent=1 // loop_header_branch
      %19 = sbr.rel (%p17) target = $region8
    $region5: #{tpu_custom_call.1} parent=1 // loop_body
      %s21 = ssub.s32 %s16, 1
      %s22 = ssub.s32 %s16, 2
      %s32 = sadd.s32 1, %s25
      %p33 = scmp.ge.s32.totalorder %s32, 3
      %s34 = scalar_select %p33, 0, %s32
      %s35 = sadd.s32 1, %s24
      %s36 = scalar_select %p33, %s35, %s24
      %p37 = scmp.ge.s32.totalorder %s36, 1
      %s38 = scalar_select %p37, 0, %s36
      %s39 = sadd.s32 1, %s23
      %s40 = scalar_select %p37, %s39, %s23
      %p41 = scmp.ge.s32.totalorder %s40, 2
      %s42 = scalar_select %p41, 0, %s40
      %s43 = smul.u32 %s24, 3
      %s44 = sadd.s32 %s43, %s25
      %s45 = smul.u32 %s38, 3
      %s46 = sadd.s32 %s45, %s34
      %s47 = ssub.s32 %s23, %s42
      %s48 = ssub.s32 %s44, %s46
      %s49 = sor.u32 %s47, %s48
      %p50 = scmp.eq.s32.totalorder %s49, 0
      %s52 = sadd.s32 %s51, 1
      %s53 = scalar_select %p50, %s51, %s52
      %p56 = pneg %p50
      %p57 = scmp.eq.s32.totalorder %s16, 5
      %p58 = por %p56, %p57
      %p59 = scmp.ne.s32.totalorder %s51, %s54
      %p60 = scmp.eq.s32.totalorder %s16, 0
      %p61 = por %p59, %p60
      %p62 = scmp.ne.s32.totalorder %s51, %s54
      %p63 = scmp.eq.s32.totalorder %s21, 5
      %p64 = por %p62, %p63
      %p65 = scmp.ne.s32.totalorder %s54, %s55
      %p66 = scmp.eq.s32.totalorder %s21, 0
      %p67 = por %p65, %p66
      %p68 = scmp.ne.s32.totalorder %s54, %s55
      %p69 = scmp.eq.s32.totalorder %s22, 5
      %p70 = por %p68, %p69
      %p72 = scmp.ne.s32.totalorder %s55, %s71
      %p73 = scmp.eq.s32.totalorder %s22, 0
      %p74 = por %p72, %p73
      %s76 = sadd.s32 %s75, 1
      %p79 = scmp.eq.s32.totalorder %s16, 5
      %p80 = scmp.ne.s32.totalorder %s75, %s77
      %p81 = scmp.eq.s32.totalorder %s16, 0
      %p82 = por %p80, %p81
      %p83 = scmp.ne.s32.totalorder %s75, %s77
      %p84 = scmp.eq.s32.totalorder %s21, 5
      %p85 = por %p83, %p84
      %p86 = scmp.ne.s32.totalorder %s77, %s78
      %p87 = scmp.eq.s32.totalorder %s21, 0
      %p88 = por %p86, %p87
      %p89 = scmp.ne.s32.totalorder %s77, %s78
      %p90 = scmp.eq.s32.totalorder %s22, 5
      %p91 = por %p89, %p90
      %p93 = scmp.ne.s32.totalorder %s78, %s92
      %p94 = scmp.eq.s32.totalorder %s22, 0
      %p95 = por %p93, %p94
      %s97 = sadd.s32 %s96, 1
      %p100 = scmp.eq.s32.totalorder %s16, 5
      %p101 = scmp.ne.s32.totalorder %s96, %s98
      %p102 = scmp.eq.s32.totalorder %s16, 0
      %p103 = por %p101, %p102
      %p104 = scmp.ne.s32.totalorder %s96, %s98
      %p105 = scmp.eq.s32.totalorder %s21, 5
      %p106 = por %p104, %p105
      %p107 = scmp.ne.s32.totalorder %s98, %s99
      %p108 = scmp.eq.s32.totalorder %s21, 0
      %p109 = por %p107, %p108
      %p110 = scmp.ne.s32.totalorder %s98, %s99
      %p111 = scmp.eq.s32.totalorder %s22, 5
      %p112 = por %p110, %p111
      %p114 = scmp.ne.s32.totalorder %s99, %s113
      %p115 = scmp.eq.s32.totalorder %s22, 0
      %p116 = por %p114, %p115
      %s117 = ssub.s32 %s23, %s42
      %s118 = ssub.s32 %s24, %s38
      %s119 = sor.u32 %s117, %s118
      %p120 = scmp.eq.s32.totalorder %s119, 0
      %s122 = sadd.s32 %s121, 1
      %s123 = scalar_select %p120, %s121, %s122
      %p126 = pneg %p120
      %p127 = scmp.eq.s32.totalorder %s16, 5
      %p128 = por %p126, %p127
      %p129 = scmp.ne.s32.totalorder %s121, %s124
      %p130 = scmp.eq.s32.totalorder %s16, 0
      %p131 = por %p129, %p130
      %p132 = scmp.ne.s32.totalorder %s121, %s124
      %p133 = scmp.eq.s32.totalorder %s21, 5
      %p134 = por %p132, %p133
      %p135 = scmp.ne.s32.totalorder %s124, %s125
      %p136 = scmp.eq.s32.totalorder %s21, 0
      %p137 = por %p135, %p136
      %p138 = scmp.ne.s32.totalorder %s124, %s125
      %p139 = scmp.eq.s32.totalorder %s22, 5
      %p140 = por %p138, %p139
      %p142 = scmp.ne.s32.totalorder %s125, %s141
      %p143 = scmp.eq.s32.totalorder %s22, 0
      %p144 = por %p142, %p143
      %p145 = scmp.le.s32.totalorder 1, %s16
      %p146 = scmp.lt.s32.totalorder %s16, 7
      %p147 = pnand %p145, %p146
      %p148 = pneg %p147
      // Predicated region
      $region9: #{tpu_custom_call.1} parent=5 // pred_check
        _
      $region10: #{tpu_custom_call.1} parent=5 // pred_check_branch
        %150 = sbr.rel (%p147) target = $region12
      $region11: #{tpu_custom_call.1} parent=5 // pred_region
        %s151 = ssub.s32 %s16, 1
        // Predicated region
        $region13: #{tpu_custom_call.1} parent=11 // pred_check
          %p152 = pneg %p88
        $region14: #{tpu_custom_call.1} parent=11 // pred_check_branch
          %154 = sbr.rel (%p152) target = $region16
        $region15: #{tpu_custom_call.1} parent=11 // pred_region
          %s156 = ssub.s32 512, 512
          %157 = vsyncadd [#allocation6], %s156
          %s158 = sshll.u32 [#allocation5], 4
          %s159 = int_to_ptr.vmem [resolvable:$true] %s158
          %164 = dma.hbm_to_vmem [thread:$0]  %s1, 512, %s159, [#allocation6], 128, 128, 8
        $region16: #{tpu_custom_call.1} parent=11 // pred_fallthru
          _
        // Predicated region
        $region17: #{tpu_custom_call.1} parent=11 // pred_check
          %p165 = pneg %p109
        $region18: #{tpu_custom_call.1} parent=11 // pred_check_branch
          %167 = sbr.rel (%p165) target = $region20
        $region19: #{tpu_custom_call.1} parent=11 // pred_region
          _
        $region20: #{tpu_custom_call.1} parent=11 // pred_fallthru
          _
      $region12: #{tpu_custom_call.1} parent=5 // pred_fallthru
        _
      %p168 = scmp.lt.s32.totalorder %s16, 6
      // Predicated region
      $region21: #{tpu_custom_call.1} parent=5 // pred_check
        %p169 = pneg %p168
      $region22: #{tpu_custom_call.1} parent=5 // pred_check_branch
        %171 = sbr.rel (%p169) target = $region24
      $region23: #{tpu_custom_call.1} parent=5 // pred_region
        // Predicated region
        $region25: #{tpu_custom_call.1} parent=23 // pred_check
          %p172 = pneg %p61
        $region26: #{tpu_custom_call.1} parent=23 // pred_check_branch
          %174 = sbr.rel (%p172) target = $region28
        $region27: #{tpu_custom_call.1} parent=23 // pred_region
          %s175 = sand.u32 %s51, 1
          %s176 = scalar_lea.sflag [#allocation3], %s175
          %s177 = sand.u32 %s51, 1
          %s178 = smul.addr %s177, 4
          %s179 = scalar_lea.vmem [#allocation2], %s178
          %s180 = smul.u32 %s24, 3
          %s181 = sadd.s32 %s180, %s25
          %s183 = ssub.s32 64, 64
          %184 = vsyncadd %s176, %s183
          %s185 = smul.addr %s23, 3
          %s186 = sadd.s32 %s181, %s185
          %s187 = smul.addr %s186, 64
          %s188 = scalar_lea.hbm %s0, %s187
          %s190 = sshll.u32 %s179, 4
          %s191 = int_to_ptr.vmem [resolvable:$true] %s190
          %193 = dma.hbm_to_vmem [thread:$0]  %s188, 64, %s191, %s176
        $region28: #{tpu_custom_call.1} parent=23 // pred_fallthru
          _
      $region24: #{tpu_custom_call.1} parent=5 // pred_fallthru
        _
      %p194 = scmp.le.s32.totalorder 1, %s16
      %p195 = scmp.lt.s32.totalorder %s16, 7
      %p196 = pnand %p194, %p195
      %p197 = pneg %p196
      // Predicated region
      $region29: #{tpu_custom_call.1} parent=5 // pred_check
        _
      $region30: #{tpu_custom_call.1} parent=5 // pred_check_branch
        %199 = sbr.rel (%p196) target = $region32
      $region31: #{tpu_custom_call.1} parent=5 // pred_region
        %s200 = ssub.s32 %s16, 1
        %s201 = sand.u32 %s54, 1
        %s202 = scalar_lea.sflag [#allocation3], %s201
        %s203 = sand.u32 %s54, 1
        %s204 = smul.addr %s203, 4
        %s205 = scalar_lea.vmem [#allocation2], %s204
        // Predicated region
        $region33: #{tpu_custom_call.1} parent=31 // pred_check
          %p206 = pneg %p67
        $region34: #{tpu_custom_call.1} parent=31 // pred_check_branch
          %208 = sbr.rel (%p206) target = $region36
        $region35: #{tpu_custom_call.1} parent=31 // pred_region
          %209 = dma.done %s202, 64
        $region36: #{tpu_custom_call.1} parent=31 // pred_fallthru
          _
        // Predicated region
        $region37: #{tpu_custom_call.1} parent=31 // pred_check
          %p210 = pneg %p88
        $region38: #{tpu_custom_call.1} parent=31 // pred_check_branch
          %212 = sbr.rel (%p210) target = $region40
        $region39: #{tpu_custom_call.1} parent=31 // pred_region
          %213 = dma.done [#allocation6], 512
        $region40: #{tpu_custom_call.1} parent=31 // pred_fallthru
          _
        %s214 = sand.u32 %s54, 1
        %s215 = scalar_lea.sflag [#allocation3], %s214
        %s216 = sand.u32 %s54, 1
        %s217 = smul.addr %s216, 4
        %s218 = scalar_lea.vmem [#allocation2], %s217
        %p219 = pneg %p67
        %p220 = pneg %p64
        %p221 = pneg %p88
        %p222 = pneg %p85
        %p223 = pneg %p109
        %p224 = pneg %p106
        %p225 = pneg %p137
        %p226 = pneg %p134
        %s227 = sand.u32 %s124, 1
        %s228 = scalar_lea.sflag [#allocation4], %s227
        %s229 = sand.u32 %s124, 1
        %s230 = scalar_lea.vmem [#allocation7], %s229
        %s231 = smul.u32 %s27, 3
        %s232 = sadd.s32 %s231, %s28
        %p234 = scmp.eq.s32.totalorder %s28, 0
        // Predicated region
        $region41: #{tpu_custom_call.1} parent=31 // pred_check
          %p235 = pneg %p234
        $region42: #{tpu_custom_call.1} parent=31 // pred_check_branch
          %237 = sbr.rel (%p235) target = $region44
        $region43: #{tpu_custom_call.1} parent=31 // pred_region
          %238 = vst [vmem:[%s230] sm:$0x1] -inf
        $region44: #{tpu_custom_call.1} parent=31 // pred_fallthru
          _
        %v239 = vld [vmem:[%s205] sm:$0xf]
        %v240 = vld [vmem:[#allocation5] sm:$0xff]
        %v241 = vld [vmem:[#allocation5 + $0x8] sm:$0xff]
        %v242 = vld [vmem:[#allocation5 + $0x10] sm:$0xff]
        %v243 = vld [vmem:[#allocation5 + $0x18] sm:$0xff]
        %v244 = vld [vmem:[%s2] sm:$0x3]
        %v246 = vlaneseq
        %v247 = vshrl.u32 %v246, 7
        %v248 = vsub.s32 0, %v247
        %v249 = vrot.slane %v244, %v248
        %v250 = vlaneseq
        %v251 = vshrl.u32 %v250, 7
        %v252 = vsub.s32 1, %v251
        %v253 = vrot.slane %v244, %v252
        %v260 = vunpack.c.l.b16 %v240
        %v261 = vunpack.c.h.b16 %v240
        %v262 = vunpack.c.l.b16 %v241
        %v263 = vunpack.c.h.b16 %v241
        %v264 = vunpack.c.l.b16 %v242
        %v265 = vunpack.c.h.b16 %v242
        %v266 = vunpack.c.l.b16 %v243
        %v267 = vunpack.c.h.b16 %v243
        %v268 = vpack.c.b16 %v262, %v260
        %v269 = vpack.c.b16 %v263, %v261
        %v270 = vpack.c.b16 %v266, %v264
        %v271 = vpack.c.b16 %v267, %v265
        %vm276 = vcmask 261120
        %v278 = vsel %vm276, %v239, 0
        %280 = vmatprep.subr.bf16.mxu0 %v269
        %281 = vmatpush1.bf16.msra.mxu0 %v268
        %282 = vmatprep.subr.bf16.mxu0 %v271
        %283 = vmatpush1.bf16.msra.mxu0 %v270
        %284 = vmatprep.subr.bf16.mxu0 0
        %285 = vmatpush1.bf16.msra.mxu0 0
        %286 = vmatprep.subr.bf16.mxu0 0
        %287 = vmatpush1.bf16.msra.mxu0 0
        %288 = vmatprep.subr.bf16.mxu0 0
        %289 = vmatpush1.bf16.msra.mxu0 0
        %290 = vmatprep.subr.bf16.mxu0 0
        %291 = vmatpush1.bf16.msra.mxu0 0
        %292 = vmatprep.subr.bf16.mxu0 0
        %293 = vmatpush1.bf16.msra.mxu0 0
        %294 = vmatprep.subr.bf16.mxu0 0
        %295 = vmatpush1.bf16.msra.mxu0 0
        %296 = vmatprep.subr.bf16.mxu0 0
        %297 = vmatpush1.bf16.msra.mxu0 0
        %298 = vmatprep.subr.bf16.mxu0 0
        %299 = vmatpush1.bf16.msra.mxu0 0
        %300 = vmatprep.subr.bf16.mxu0 0
        %301 = vmatpush1.bf16.msra.mxu0 0
        %302 = vmatprep.subr.bf16.mxu0 0
        %303 = vmatpush1.bf16.msra.mxu0 0
        %304 = vmatprep.subr.bf16.mxu0 0
        %305 = vmatpush1.bf16.msra.mxu0 0
        %306 = vmatprep.subr.bf16.mxu0 0
        %307 = vmatpush1.bf16.msra.mxu0 0
        %308 = vmatprep.subr.bf16.mxu0 0
        %309 = vmatpush1.bf16.msra.mxu0 0
        %310 = vmatprep.subr.bf16.mxu0 0
        %311 = vmatpush1.bf16.msra.mxu0 0
        %312 = vmatprep.mubr.bf16.mxu0 0
        %313 = vmatmul.mubr.bf16.gmra.mrb[0].mxu0 %v278
        %v314 = vpop.f32.mrb[0].mxu0
        %v315 = vadd.f32 %v249, %v314
        %v316 = vpop.f32.mrb[0].mxu0
        %v317 = vadd.f32 %v253, %v316
        %v318 = vpop.f32.mrb[0].mxu0
        %v319 = vpop.f32.mrb[0].mxu0
        %320 = vdwg.mxu0
        %v321 = vsub.f32 0.0, %v317
        %v322 = vmul.f32 %v321, 1.442695
        %v323 = vpow.pop %v322
        %v324 = vadd.f32 %v323, 1.0
        %v325 = vrcp.pop %v324
        %v326 = vmul.f32 %v315, %v325
        %s327 = smul.u32 %s27, 3
        %s328 = sadd.s32 %s327, %s28
        %s329 = smul.u32 %s328, 8
        %s330 = sadd.s32 %s329, 8
        %p331 = scmp.gt.s32.totalorder %s330, 18
        %p332 = scmp.le.s32.totalorder %s330, 18
        // Predicated region
        $region45: #{tpu_custom_call.1} parent=31 // pred_check
          %p333 = pneg %p332
        $region46: #{tpu_custom_call.1} parent=31 // pred_check_branch
          %335 = sbr.rel (%p333) target = $region48
        $region47: #{tpu_custom_call.1} parent=31 // pred_region
          %v336 = vld [vmem:[%s230] sm:$0x1]
          %v337 = vrot.slane %v326, 4
          %v338 = vmax.f32 %v326, %v337
          %v339 = vrot.slane %v338, 2
          %v340 = vmax.f32 %v338, %v339
          %v341 = vrot.slane %v340, 1
          %v342 = vmax.f32 %v340, %v341
          %v343 = vmax.f32 %v336, %v342
          %344 = vst [vmem:[%s230] sm:$0x1] %v343
        $region48: #{tpu_custom_call.1} parent=31 // pred_fallthru
          _
        // Predicated region
        $region49: #{tpu_custom_call.1} parent=31 // pred_check
          %p345 = pneg %p331
        $region50: #{tpu_custom_call.1} parent=31 // pred_check_branch
          %347 = sbr.rel (%p345) target = $region52
        $region51: #{tpu_custom_call.1} parent=31 // pred_region
          %v348 = vlaneseq
          %v349 = vshrl.u32 %v348, 7
          %v350 = vstv %s329
          %v351 = vadd.s32 %v349, %v350
          %vm352 = vcmp.lt.s32.totalorder %v351, 18
          %v353 = vsel %vm352, %v326, -inf
          %v354 = vld [vmem:[%s230] sm:$0x1]
          %v355 = vrot.slane %v353, 4
          %v356 = vmax.f32 %v353, %v355
          %v357 = vrot.slane %v356, 2
          %v358 = vmax.f32 %v356, %v357
          %v359 = vrot.slane %v358, 1
          %v360 = vmax.f32 %v358, %v359
          %v361 = vmax.f32 %v354, %v360
          %362 = vst [vmem:[%s230] sm:$0x1] %v361
        $region52: #{tpu_custom_call.1} parent=31 // pred_fallthru
          _
        %s363 = sand.u32 %s124, 1
        %s364 = scalar_lea.sflag [#allocation4], %s363
        %s365 = sand.u32 %s124, 1
        %s366 = scalar_lea.vmem [#allocation7], %s365
        // Predicated region
        $region53: #{tpu_custom_call.1} parent=31 // pred_check
          %p367 = pneg %p134
        $region54: #{tpu_custom_call.1} parent=31 // pred_check_branch
          %369 = sbr.rel (%p367) target = $region56
        $region55: #{tpu_custom_call.1} parent=31 // pred_region
          %s371 = ssub.s32 16, 16
          %372 = vsyncadd %s364, %s371
          %s373 = sadd.s32 %s27, %s26
          %s374 = smul.addr %s373, 16
          %s375 = scalar_lea.hbm %s3, %s374
          %s377 = sshll.u32 %s366, 4
          %s378 = int_to_ptr.vmem [resolvable:$true] %s377
          %380 = dma.vmem_to_hbm [thread:$0]  %s378, 16, %s375, %s364
        $region56: #{tpu_custom_call.1} parent=31 // pred_fallthru
          _
      $region32: #{tpu_custom_call.1} parent=5 // pred_fallthru
        _
      %p381 = scmp.le.s32.totalorder 2, %s16
      // Predicated region
      $region57: #{tpu_custom_call.1} parent=5 // pred_check
        %p382 = pneg %p381
      $region58: #{tpu_custom_call.1} parent=5 // pred_check_branch
        %384 = sbr.rel (%p382) target = $region60
      $region59: #{tpu_custom_call.1} parent=5 // pred_region
        %s385 = ssub.s32 %s16, 2
        // Predicated region
        $region61: #{tpu_custom_call.1} parent=59 // pred_check
          %p386 = pneg %p140
        $region62: #{tpu_custom_call.1} parent=59 // pred_check_branch
          %388 = sbr.rel (%p386) target = $region64
        $region63: #{tpu_custom_call.1} parent=59 // pred_region
          %s389 = sand.u32 %s125, 1
          %s390 = scalar_lea.sflag [#allocation4], %s389
          %s391 = sand.u32 %s125, 1
          %s392 = scalar_lea.vmem [#allocation7], %s391
          %393 = dma.done %s390, 16
        $region64: #{tpu_custom_call.1} parent=59 // pred_fallthru
          _
      $region60: #{tpu_custom_call.1} parent=5 // pred_fallthru
        _
    $region6: #{tpu_custom_call.1} parent=1 // loop_footer
      %s20 = sadd.s32 1, %s16
    $region7: #{tpu_custom_call.1} parent=1 // loop_footer_branch
      %15 = sbr.rel target = $region3
    $region8: #{tpu_custom_call.1} parent=1 // loop_exit
      _
    %394 = vsyncpa [#allocation3], 1
    %s395 = scalar_lea.sflag [#allocation3], 1
    %396 = vsyncpa %s395, 1
    %397 = vsyncpa [#allocation6], 1
    %398 = vsyncpa [#allocation4], 1
    %s399 = scalar_lea.sflag [#allocation4], 1
    %400 = vsyncpa %s399, 1

// kernel: tpu_custom_call.1
$region0: #{tpu_custom_call.1}
  #allocation0 [shape = 'u32[]', space=smem, size = 0x4, offset = 0x4, fixed_abs, tag = 'smem constant byte address 0x4 - core index']
  #allocation1 [shape = 'u32[144,128]{1,0:T(1,128)}', space=vmem, size = 0x12000, scoped, tag = 'internal scratch']
  %s0 = inlined_call_operand.hbm [shape: bf16[2,24,32], index: 0, kind: input, shape index: {}]
  %s1 = inlined_call_operand.hbm [shape: bf16[32,256], index: 1, kind: input, shape index: {}]
  %s2 = inlined_call_operand.vmem [shape: f32[1,256], index: 2, kind: input, shape index: {}]
  %s3 = inlined_call_operand.hbm [shape: f32[2,1,1,128], index: 3, kind: output, shape index: {}]
  %s4 = sld [smem:[#allocation0]]
  $region65: #{tpu_custom_call.1} parent=0
    _
  %s6 = ssub.s32 1, %s4
  %s7 = scalar_select 0, %s6, %s4
  $region1: #{tpu_custom_call.1} parent=0
    #allocation2 [shape = 'u8[4096]{0}', space=vmem, size = 0x1000, scoped, tag = 'input window, operand 0']
    #allocation3 [shape = 's32[2]{0}', space=sflag, size = 0x8, scoped, tag = 'scoped memory for tpu_custom_call.1']
    #allocation4 [shape = 's32[2]{0}', space=sflag, size = 0x8, scoped, tag = 'scoped memory for tpu_custom_call.1']
    #allocation5 [shape = 'u8[16384]{0}', space=vmem, size = 0x4000, scoped, tag = 'input window, operand 1, single buffered']
    #allocation6 [shape = 's32[1]{0}', space=sflag, size = 0x4, scoped, tag = 'scoped memory for tpu_custom_call.1']
    #allocation7 [shape = 'u8[1024]{0}', space=vmem, size = 0x400, scoped, tag = 'output window, operand 0']
    %8 = vsyncpa [#allocation3], 0
    %s9 = scalar_lea.sflag [#allocation3], 1
    %10 = vsyncpa %s9, 0
    %11 = vsyncpa [#allocation6], 0
    %12 = vsyncpa [#allocation4], 0
    %s13 = scalar_lea.sflag [#allocation4], 1
    %14 = vsyncpa %s13, 0
    loop: start=0, step=1, limit=8
    $region2: #{tpu_custom_call.1} parent=1 // loop_pre_header
      _
    $region3: #{tpu_custom_call.1} parent=1 // loop_header
      %s16 = sphi 0, %s20
      %p17 = scmp.ge.s32.totalorder %s16, 8
      %s23 = sphi 0, %s42
      %s24 = sphi 0, %s38
      %s25 = sphi 0, %s34
      %s26 = sphi 0, %s23
      %s27 = sphi 0, %s24
      %s28 = sphi 0, %s25
      %s29 = sphi 0, %s26
      %s30 = sphi 0, %s27
      %s31 = sphi 0, %s28
      %s51 = sphi 0, %s53
      %s54 = sphi 0, %s51
      %s55 = sphi 0, %s54
      %s71 = sphi 0, %s55
      %s75 = sphi 0, %s75
      %s77 = sphi 0, %s75
      %s78 = sphi 0, %s77
      %s92 = sphi 0, %s78
      %s96 = sphi 0, %s96
      %s98 = sphi 0, %s96
      %s99 = sphi 0, %s98
      %s113 = sphi 0, %s99
      %s121 = sphi 0, %s123
      %s124 = sphi 0, %s121
      %s125 = sphi 0, %s124
      %s141 = sphi 0, %s125
    $region4: #{tpu_custom_call.1} parent=1 // loop_header_branch
      %19 = sbr.rel (%p17) target = $region8
    $region5: #{tpu_custom_call.1} parent=1 // loop_body
      %s21 = ssub.s32 %s16, 1
      %s22 = ssub.s32 %s16, 2
      %s32 = sadd.s32 1, %s25
      %p33 = scmp.ge.s32.totalorder %s32, 3
      %s34 = scalar_select %p33, 0, %s32
      %s35 = sadd.s32 1, %s24
      %s36 = scalar_select %p33, %s35, %s24
      %p37 = scmp.ge.s32.totalorder %s36, 1
      %s38 = scalar_select %p37, 0, %s36
      %s39 = sadd.s32 1, %s23
      %s40 = scalar_select %p37, %s39, %s23
      %p41 = scmp.ge.s32.totalorder %s40, 2
      %s42 = scalar_select %p41, 0, %s40
      %s43 = smul.u32 %s24, 3
      %s44 = sadd.s32 %s43, %s25
      %s45 = smul.u32 %s38, 3
      %s46 = sadd.s32 %s45, %s34
      %s47 = ssub.s32 %s23, %s42
      %s48 = ssub.s32 %s44, %s46
      %s49 = sor.u32 %s47, %s48
      %p50 = scmp.eq.s32.totalorder %s49, 0
      %s52 = sadd.s32 %s51, 1
      %s53 = scalar_select %p50, %s51, %s52
      %p56 = pneg %p50
      %p57 = scmp.eq.s32.totalorder %s16, 5
      %p58 = por %p56, %p57
      %p59 = scmp.ne.s32.totalorder %s51, %s54
      %p60 = scmp.eq.s32.totalorder %s16, 0
      %p61 = por %p59, %p60
      %p62 = scmp.ne.s32.totalorder %s51, %s54
      %p63 = scmp.eq.s32.totalorder %s21, 5
      %p64 = por %p62, %p63
      %p65 = scmp.ne.s32.totalorder %s54, %s55
      %p66 = scmp.eq.s32.totalorder %s21, 0
      %p67 = por %p65, %p66
      %p68 = scmp.ne.s32.totalorder %s54, %s55
      %p69 = scmp.eq.s32.totalorder %s22, 5
      %p70 = por %p68, %p69
      %p72 = scmp.ne.s32.totalorder %s55, %s71
      %p73 = scmp.eq.s32.totalorder %s22, 0
      %p74 = por %p72, %p73
      %s76 = sadd.s32 %s75, 1
      %p79 = scmp.eq.s32.totalorder %s16, 5
      %p80 = scmp.ne.s32.totalorder %s75, %s77
      %p81 = scmp.eq.s32.totalorder %s16, 0
      %p82 = por %p80, %p81
      %p83 = scmp.ne.s32.totalorder %s75, %s77
      %p84 = scmp.eq.s32.totalorder %s21, 5
      %p85 = por %p83, %p84
      %p86 = scmp.ne.s32.totalorder %s77, %s78
      %p87 = scmp.eq.s32.totalorder %s21, 0
      %p88 = por %p86, %p87
      %p89 = scmp.ne.s32.totalorder %s77, %s78
      %p90 = scmp.eq.s32.totalorder %s22, 5
      %p91 = por %p89, %p90
      %p93 = scmp.ne.s32.totalorder %s78, %s92
      %p94 = scmp.eq.s32.totalorder %s22, 0
      %p95 = por %p93, %p94
      %s97 = sadd.s32 %s96, 1
      %p100 = scmp.eq.s32.totalorder %s16, 5
      %p101 = scmp.ne.s32.totalorder %s96, %s98
      %p102 = scmp.eq.s32.totalorder %s16, 0
      %p103 = por %p101, %p102
      %p104 = scmp.ne.s32.totalorder %s96, %s98
      %p105 = scmp.eq.s32.totalorder %s21, 5
      %p106 = por %p104, %p105
      %p107 = scmp.ne.s32.totalorder %s98, %s99
      %p108 = scmp.eq.s32.totalorder %s21, 0
      %p109 = por %p107, %p108
      %p110 = scmp.ne.s32.totalorder %s98, %s99
      %p111 = scmp.eq.s32.totalorder %s22, 5
      %p112 = por %p110, %p111
      %p114 = scmp.ne.s32.totalorder %s99, %s113
      %p115 = scmp.eq.s32.totalorder %s22, 0
      %p116 = por %p114, %p115
      %s117 = ssub.s32 %s23, %s42
      %s118 = ssub.s32 %s24, %s38
      %s119 = sor.u32 %s117, %s118
      %p120 = scmp.eq.s32.totalorder %s119, 0
      %s122 = sadd.s32 %s121, 1
      %s123 = scalar_select %p120, %s121, %s122
      %p126 = pneg %p120
      %p127 = scmp.eq.s32.totalorder %s16, 5
      %p128 = por %p126, %p127
      %p129 = scmp.ne.s32.totalorder %s121, %s124
      %p130 = scmp.eq.s32.totalorder %s16, 0
      %p131 = por %p129, %p130
      %p132 = scmp.ne.s32.totalorder %s121, %s124
      %p133 = scmp.eq.s32.totalorder %s21, 5
      %p134 = por %p132, %p133
      %p135 = scmp.ne.s32.totalorder %s124, %s125
      %p136 = scmp.eq.s32.totalorder %s21, 0
      %p137 = por %p135, %p136
      %p138 = scmp.ne.s32.totalorder %s124, %s125
      %p139 = scmp.eq.s32.totalorder %s22, 5
      %p140 = por %p138, %p139
      %p142 = scmp.ne.s32.totalorder %s125, %s141
      %p143 = scmp.eq.s32.totalorder %s22, 0
      %p144 = por %p142, %p143
      %p145 = scmp.le.s32.totalorder 1, %s16
      %p146 = scmp.lt.s32.totalorder %s16, 7
      %p147 = pnand %p145, %p146
      %p148 = pneg %p147
      // Predicated region
      $region9: #{tpu_custom_call.1} parent=5 // pred_check
        _
      $region10: #{tpu_custom_call.1} parent=5 // pred_check_branch
        %150 = sbr.rel (%p147) target = $region12
      $region11: #{tpu_custom_call.1} parent=5 // pred_region
        %s151 = ssub.s32 %s16, 1
        // Predicated region
        $region13: #{tpu_custom_call.1} parent=11 // pred_check
          %p152 = pneg %p88
        $region14: #{tpu_custom_call.1} parent=11 // pred_check_branch
          %154 = sbr.rel (%p152) target = $region16
        $region15: #{tpu_custom_call.1} parent=11 // pred_region
          %s156 = ssub.s32 512, 512
          %157 = vsyncadd [#allocation6], %s156
          %s158 = sshll.u32 [#allocation5], 4
          %s159 = int_to_ptr.vmem [resolvable:$true] %s158
          %164 = dma.hbm_to_vmem [thread:$0]  %s1, 512, %s159, [#allocation6], 128, 128, 8
        $region16: #{tpu_custom_call.1} parent=11 // pred_fallthru
          _
        // Predicated region
        $region17: #{tpu_custom_call.1} parent=11 // pred_check
          %p165 = pneg %p109
        $region18: #{tpu_custom_call.1} parent=11 // pred_check_branch
          %167 = sbr.rel (%p165) target = $region20
        $region19: #{tpu_custom_call.1} parent=11 // pred_region
          _
        $region20: #{tpu_custom_call.1} parent=11 // pred_fallthru
          _
      $region12: #{tpu_custom_call.1} parent=5 // pred_fallthru
        _
      %p168 = scmp.lt.s32.totalorder %s16, 6
      // Predicated region
      $region21: #{tpu_custom_call.1} parent=5 // pred_check
        %p169 = pneg %p168
      $region22: #{tpu_custom_call.1} parent=5 // pred_check_branch
        %171 = sbr.rel (%p169) target = $region24
      $region23: #{tpu_custom_call.1} parent=5 // pred_region
        // Predicated region
        $region25: #{tpu_custom_call.1} parent=23 // pred_check
          %p172 = pneg %p61
        $region26: #{tpu_custom_call.1} parent=23 // pred_check_branch
          %174 = sbr.rel (%p172) target = $region28
        $region27: #{tpu_custom_call.1} parent=23 // pred_region
          %s175 = sand.u32 %s51, 1
          %s176 = scalar_lea.sflag [#allocation3], %s175
          %s177 = sand.u32 %s51, 1
          %s178 = smul.addr %s177, 4
          %s179 = scalar_lea.vmem [#allocation2], %s178
          %s180 = smul.u32 %s24, 3
          %s181 = sadd.s32 %s180, %s25
          %s183 = ssub.s32 64, 64
          %184 = vsyncadd %s176, %s183
          %s185 = smul.addr %s23, 3
          %s186 = sadd.s32 %s181, %s185
          %s187 = smul.addr %s186, 64
          %s188 = scalar_lea.hbm %s0, %s187
          %s190 = sshll.u32 %s179, 4
          %s191 = int_to_ptr.vmem [resolvable:$true] %s190
          %193 = dma.hbm_to_vmem [thread:$0]  %s188, 64, %s191, %s176
        $region28: #{tpu_custom_call.1} parent=23 // pred_fallthru
          _
      $region24: #{tpu_custom_call.1} parent=5 // pred_fallthru
        _
      %p194 = scmp.le.s32.totalorder 1, %s16
      %p195 = scmp.lt.s32.totalorder %s16, 7
      %p196 = pnand %p194, %p195
      %p197 = pneg %p196
      // Predicated region
      $region29: #{tpu_custom_call.1} parent=5 // pred_check
        _
      $region30: #{tpu_custom_call.1} parent=5 // pred_check_branch
        %199 = sbr.rel (%p196) target = $region32
      $region31: #{tpu_custom_call.1} parent=5 // pred_region
        %s200 = ssub.s32 %s16, 1
        %s201 = sand.u32 %s54, 1
        %s202 = scalar_lea.sflag [#allocation3], %s201
        %s203 = sand.u32 %s54, 1
        %s204 = smul.addr %s203, 4
        %s205 = scalar_lea.vmem [#allocation2], %s204
        // Predicated region
        $region33: #{tpu_custom_call.1} parent=31 // pred_check
          %p206 = pneg %p67
        $region34: #{tpu_custom_call.1} parent=31 // pred_check_branch
          %208 = sbr.rel (%p206) target = $region36
        $region35: #{tpu_custom_call.1} parent=31 // pred_region
          %209 = dma.done %s202, 64
        $region36: #{tpu_custom_call.1} parent=31 // pred_fallthru
          _
        // Predicated region
        $region37: #{tpu_custom_call.1} parent=31 // pred_check
          %p210 = pneg %p88
        $region38: #{tpu_custom_call.1} parent=31 // pred_check_branch
          %212 = sbr.rel (%p210) target = $region40
        $region39: #{tpu_custom_call.1} parent=31 // pred_region
          %213 = dma.done [#allocation6], 512
        $region40: #{tpu_custom_call.1} parent=31 // pred_fallthru
          _
        %s214 = sand.u32 %s54, 1
        %s215 = scalar_lea.sflag [#allocation3], %s214
        %s216 = sand.u32 %s54, 1
        %s217 = smul.addr %s216, 4
        %s218 = scalar_lea.vmem [#allocation2], %s217
        %p219 = pneg %p67
        %p220 = pneg %p64
        %p221 = pneg %p88
        %p222 = pneg %p85
        %p223 = pneg %p109
        %p224 = pneg %p106
        %p225 = pneg %p137
        %p226 = pneg %p134
        %s227 = sand.u32 %s124, 1
        %s228 = scalar_lea.sflag [#allocation4], %s227
        %s229 = sand.u32 %s124, 1
        %s230 = scalar_lea.vmem [#allocation7], %s229
        %s231 = smul.u32 %s27, 3
        %s232 = sadd.s32 %s231, %s28
        %p234 = scmp.eq.s32.totalorder %s28, 0
        // Predicated region
        $region41: #{tpu_custom_call.1} parent=31 // pred_check
          %p235 = pneg %p234
        $region42: #{tpu_custom_call.1} parent=31 // pred_check_branch
          %237 = sbr.rel (%p235) target = $region44
        $region43: #{tpu_custom_call.1} parent=31 // pred_region
          %238 = vst [vmem:[%s230] sm:$0x1] -inf
        $region44: #{tpu_custom_call.1} parent=31 // pred_fallthru
          _
        %v239 = vld [vmem:[%s205] sm:$0xf]
        %v240 = vld [vmem:[#allocation5] sm:$0xff]
        %v241 = vld [vmem:[#allocation5 + $0x8] sm:$0xff]
        %v242 = vld [vmem:[#allocation5 + $0x10] sm:$0xff]
        %v243 = vld [vmem:[#allocation5 + $0x18] sm:$0xff]
        %v244 = vld [vmem:[%s2] sm:$0x3]
        %v246 = vlaneseq
        %v247 = vshrl.u32 %v246, 7
        %v248 = vsub.s32 0, %v247
        %v249 = vrot.slane %v244, %v248
        %v250 = vlaneseq
        %v251 = vshrl.u32 %v250, 7
        %v252 = vsub.s32 1, %v251
        %v253 = vrot.slane %v244, %v252
        %v260 = vunpack.c.l.b16 %v240
        %v261 = vunpack.c.h.b16 %v240
        %v262 = vunpack.c.l.b16 %v241
        %v263 = vunpack.c.h.b16 %v241
        %v264 = vunpack.c.l.b16 %v242
        %v265 = vunpack.c.h.b16 %v242
        %v266 = vunpack.c.l.b16 %v243
        %v267 = vunpack.c.h.b16 %v243
        %v268 = vpack.c.b16 %v262, %v260
        %v269 = vpack.c.b16 %v263, %v261
        %v270 = vpack.c.b16 %v266, %v264
        %v271 = vpack.c.b16 %v267, %v265
        %vm276 = vcmask 261120
        %v278 = vsel %vm276, %v239, 0
        %280 = vmatprep.subr.bf16.mxu0 %v269
        %281 = vmatpush1.bf16.msra.mxu0 %v268
        %282 = vmatprep.subr.bf16.mxu0 %v271
        %283 = vmatpush1.bf16.msra.mxu0 %v270
        %284 = vmatprep.subr.bf16.mxu0 0
        %285 = vmatpush1.bf16.msra.mxu0 0
        %286 = vmatprep.subr.bf16.mxu0 0
        %287 = vmatpush1.bf16.msra.mxu0 0
        %288 = vmatprep.subr.bf16.mxu0 0
        %289 = vmatpush1.bf16.msra.mxu0 0
        %290 = vmatprep.subr.bf16.mxu0 0
        %291 = vmatpush1.bf16.msra.mxu0 0
        %292 = vmatprep.subr.bf16.mxu0 0
        %293 = vmatpush1.bf16.msra.mxu0 0
        %294 = vmatprep.subr.bf16.mxu0 0
        %295 = vmatpush1.bf16.msra.mxu0 0
        %296 = vmatprep.subr.bf16.mxu0 0
        %297 = vmatpush1.bf16.msra.mxu0 0
        %298 = vmatprep.subr.bf16.mxu0 0
        %299 = vmatpush1.bf16.msra.mxu0 0
        %300 = vmatprep.subr.bf16.mxu0 0
        %301 = vmatpush1.bf16.msra.mxu0 0
        %302 = vmatprep.subr.bf16.mxu0 0
        %303 = vmatpush1.bf16.msra.mxu0 0
        %304 = vmatprep.subr.bf16.mxu0 0
        %305 = vmatpush1.bf16.msra.mxu0 0
        %306 = vmatprep.subr.bf16.mxu0 0
        %307 = vmatpush1.bf16.msra.mxu0 0
        %308 = vmatprep.subr.bf16.mxu0 0
        %309 = vmatpush1.bf16.msra.mxu0 0
        %310 = vmatprep.subr.bf16.mxu0 0
        %311 = vmatpush1.bf16.msra.mxu0 0
        %312 = vmatprep.mubr.bf16.mxu0 0
        %313 = vmatmul.mubr.bf16.gmra.mrb[0].mxu0 %v278
        %v314 = vpop.f32.mrb[0].mxu0
        %v315 = vadd.f32 %v249, %v314
        %v316 = vpop.f32.mrb[0].mxu0
        %v317 = vadd.f32 %v253, %v316
        %v318 = vpop.f32.mrb[0].mxu0
        %v319 = vpop.f32.mrb[0].mxu0
        %320 = vdwg.mxu0
        %v321 = vsub.f32 0.0, %v317
        %v322 = vmul.f32 %v321, 1.442695
        %v323 = vpow.pop %v322
        %v324 = vadd.f32 %v323, 1.0
        %v325 = vrcp.pop %v324
        %v326 = vmul.f32 %v315, %v325
        %s327 = smul.u32 %s27, 3
        %s328 = sadd.s32 %s327, %s28
        %s329 = smul.u32 %s328, 8
        %s330 = sadd.s32 %s329, 8
        %p331 = scmp.gt.s32.totalorder %s330, 18
        %p332 = scmp.le.s32.totalorder %s330, 18
        // Predicated region
        $region45: #{tpu_custom_call.1} parent=31 // pred_check
          %p333 = pneg %p332
        $region46: #{tpu_custom_call.1} parent=31 // pred_check_branch
          %335 = sbr.rel (%p333) target = $region48
        $region47: #{tpu_custom_call.1} parent=31 // pred_region
          %v336 = vld [vmem:[%s230] sm:$0x1]
          %v337 = vrot.slane %v326, 4
          %v338 = vmax.f32 %v326, %v337
          %v339 = vrot.slane %v338, 2
          %v340 = vmax.f32 %v338, %v339
          %v341 = vrot.slane %v340, 1
          %v342 = vmax.f32 %v340, %v341
          %v343 = vmax.f32 %v336, %v342
          %344 = vst [vmem:[%s230] sm:$0x1] %v343
        $region48: #{tpu_custom_call.1} parent=31 // pred_fallthru
          _
        // Predicated region
        $region49: #{tpu_custom_call.1} parent=31 // pred_check
          %p345 = pneg %p331
        $region50: #{tpu_custom_call.1} parent=31 // pred_check_branch
          %347 = sbr.rel (%p345) target = $region52
        $region51: #{tpu_custom_call.1} parent=31 // pred_region
          %v348 = vlaneseq
          %v349 = vshrl.u32 %v348, 7
          %v350 = vstv %s329
          %v351 = vadd.s32 %v349, %v350
          %vm352 = vcmp.lt.s32.totalorder %v351, 18
          %v353 = vsel %vm352, %v326, -inf
          %v354 = vld [vmem:[%s230] sm:$0x1]
          %v355 = vrot.slane %v353, 4
          %v356 = vmax.f32 %v353, %v355
          %v357 = vrot.slane %v356, 2
          %v358 = vmax.f32 %v356, %v357
          %v359 = vrot.slane %v358, 1
          %v360 = vmax.f32 %v358, %v359
          %v361 = vmax.f32 %v354, %v360
          %362 = vst [vmem:[%s230] sm:$0x1] %v361
        $region52: #{tpu_custom_call.1} parent=31 // pred_fallthru
          _
        %s363 = sand.u32 %s124, 1
        %s364 = scalar_lea.sflag [#allocation4], %s363
        %s365 = sand.u32 %s124, 1
        %s366 = scalar_lea.vmem [#allocation7], %s365
        // Predicated region
        $region53: #{tpu_custom_call.1} parent=31 // pred_check
          %p367 = pneg %p134
        $region54: #{tpu_custom_call.1} parent=31 // pred_check_branch
          %369 = sbr.rel (%p367) target = $region56
        $region55: #{tpu_custom_call.1} parent=31 // pred_region
          %s371 = ssub.s32 16, 16
          %372 = vsyncadd %s364, %s371
          %s373 = sadd.s32 %s27, %s26
          %s374 = smul.addr %s373, 16
          %s375 = scalar_lea.hbm %s3, %s374
          %s377 = sshll.u32 %s366, 4
          %s378 = int_to_ptr.vmem [resolvable:$true] %s377
          %380 = dma.vmem_to_hbm [thread:$0]  %s378, 16, %s375, %s364
        $region56: #{tpu_custom_call.1} parent=31 // pred_fallthru
          _
      $region32: #{tpu_custom_call.1} parent=5 // pred_fallthru
        _
      %p381 = scmp.le.s32.totalorder 2, %s16
      // Predicated region
      $region57: #{tpu_custom_call.1} parent=5 // pred_check
        %p382 = pneg %p381
      $region58: #{tpu_custom_call.1} parent=5 // pred_check_branch
        %384 = sbr.rel (%p382) target = $region60
      $region59: #{tpu_custom_call.1} parent=5 // pred_region
        %s385 = ssub.s32 %s16, 2
        // Predicated region
        $region61: #{tpu_custom_call.1} parent=59 // pred_check
          %p386 = pneg %p140
        $region62: #{tpu_custom_call.1} parent=59 // pred_check_branch
          %388 = sbr.rel (%p386) target = $region64
        $region63: #{tpu_custom_call.1} parent=59 // pred_region
          %s389 = sand.u32 %s125, 1
          %s390 = scalar_lea.sflag [#allocation4], %s389
          %s391 = sand.u32 %s125, 1
          %s392 = scalar_lea.vmem [#allocation7], %s391
          %393 = dma.done %s390, 16
        $region64: #{tpu_custom_call.1} parent=59 // pred_fallthru
          _
      $region60: #{tpu_custom_call.1} parent=5 // pred_fallthru
        _
    $region6: #{tpu_custom_call.1} parent=1 // loop_footer
      %s20 = sadd.s32 1, %s16
    $region7: #{tpu_custom_call.1} parent=1 // loop_footer_branch
      %15 = sbr.rel target = $region3
    $region8: #{tpu_custom_call.1} parent=1 // loop_exit
      _
    %394 = vsyncpa [#allocation3], 1
    %s395 = scalar_lea.sflag [#allocation3], 1
    %396 = vsyncpa %s395, 1
    %397 = vsyncpa [#allocation6], 1
    %398 = vsyncpa [#allocation4], 1
    %s399 = scalar_lea.sflag [#allocation4], 1
    %400 = vsyncpa %s399, 1

</llo_original>
